<compile_context>
chip_gen: v6e
topology: v6e:2x2x1
jax: 0.10.0
libtpu: 0.0.40
codegen_flags: <defaults>
</compile_context>

<pallas_src>
import functools

import jax
import jax.numpy as jnp
from jax.experimental import pallas as pl
from jax.experimental.pallas import tpu as pltpu

INPUT_SIZE = 36
HIDDEN_SIZES = [100, 100, 100, 100, 100]
PAD = 128          # padded hidden width (lane dim)
MAX_BM = 512       # max batch tile (sublane dim)


def _leaky_relu(x, negative_slope=0.2):
    return jnp.where(x > 0, x, negative_slope * x)


def _mlp_kernel(x_ref,
                w1_ref, b1_ref,
                w2_ref, b2_ref,
                w3_ref, b3_ref,
                w4_ref, b4_ref,
                w5_ref, b5_ref,
                w6_ref, b6_ref,
                o_ref):
    """Fused forward pass for one batch tile.

    x_ref : (BM, 36)        unpadded inputs
    w1    : (36, 128)       zero-padded first weight (in x out)
    w2..5 : (128, 128)      zero-padded hidden weights
    b1..5 : (1, 128)        zero-padded biases
    w6    : (1, 128)        final weight as a lane row (zero-padded)
    b6    : (1, 1)          final bias
    o_ref : (BM, 1)         critic output column
    """
    def linear(h, w_ref, b_ref):
        return jnp.dot(h, w_ref[...], preferred_element_type=jnp.float32) + b_ref[...]

    h = x_ref[...]
    h = _leaky_relu(linear(h, w1_ref, b1_ref))
    h = _leaky_relu(linear(h, w2_ref, b2_ref))
    h = _leaky_relu(linear(h, w3_ref, b3_ref))
    h = _leaky_relu(linear(h, w4_ref, b4_ref))
    h = _leaky_relu(linear(h, w5_ref, b5_ref))
    # Final 100 -> 1 layer: VPU multiply + lane reduction (padded lanes are zero
    # in both h and w6, so they contribute nothing).
    o_ref[...] = jnp.sum(h * w6_ref[...], axis=-1, keepdims=True) + b6_ref[...]


def prepare_params(params):
    """One-time prep (outside the hot path): zero-pad weights/biases to 128 lanes
    and flatten the final (100, 1) weight into a (1, 128) lane row."""
    *hidden, (w_out, b_out) = params
    prepped = []
    for layer_idx, (w, b) in enumerate(hidden):
        fan_in, fan_out = w.shape
        k_dim = fan_in if layer_idx == 0 else PAD   # first layer keeps K = 36
        wp = jnp.zeros((k_dim, PAD), jnp.float32).at[:fan_in, :fan_out].set(
            jnp.asarray(w, jnp.float32))
        bp = jnp.zeros((1, PAD), jnp.float32).at[0, :fan_out].set(
            jnp.asarray(b, jnp.float32))
        prepped += [wp, bp]
    w_row = jnp.zeros((1, PAD), jnp.float32).at[0, :w_out.shape[0]].set(
        jnp.asarray(w_out, jnp.float32)[:, 0])
    b_fin = jnp.asarray(b_out, jnp.float32).reshape(1, 1)
    prepped += [w_row, b_fin]
    return tuple(prepped)


@jax.jit
def lgn_discriminator_forward(x, prepared):
    """x: (B, 36) -> (B,) critic output. `prepared` comes from prepare_params()."""
    B = x.shape[0]
    BM = min(MAX_BM, ((B + 7) // 8) * 8)          # adaptive batch tile
    B_pad = ((B + BM - 1) // BM) * BM
    x = x.astype(jnp.float32)
    if B_pad != B:
        x = jnp.pad(x, ((0, B_pad - B), (0, 0)))

    (w1, b1, w2, b2, w3, b3, w4, b4, w5, b5, w6, b6) = prepared

    wspec_in = pl.BlockSpec((INPUT_SIZE, PAD), lambda i: (0, 0))
    wspec_h = pl.BlockSpec((PAD, PAD), lambda i: (0, 0))
    bspec = pl.BlockSpec((1, PAD), lambda i: (0, 0))
    wspec_row = pl.BlockSpec((1, PAD), lambda i: (0, 0))
    bspec_out = pl.BlockSpec((1, 1), lambda i: (0, 0))

    out = pl.pallas_call(
        _mlp_kernel,
        out_shape=jax.ShapeDtypeStruct((B_pad, 1), jnp.float32),
        grid_spec=pl.GridSpec(
            grid=(B_pad // BM,),
            in_specs=[
                pl.BlockSpec((BM, INPUT_SIZE), lambda i: (i, 0)),
                wspec_in, bspec,
                wspec_h, bspec,
                wspec_h, bspec,
                wspec_h, bspec,
                wspec_h, bspec,
                wspec_row, bspec_out,
            ],
            out_specs=pl.BlockSpec((BM, 1), lambda i: (i, 0)),
        ),
        compiler_params=pltpu.CompilerParams(
            dimension_semantics=("parallel",)),
    )(x, w1, b1, w2, b2, w3, b3, w4, b4, w5, b5, w6, b6)

    # Mirrors `.view(-1)`; drop padded batch rows.
    return out[:B, 0]


def init_params(key):
    """Deterministic init mimicking PyTorch Linear default (U[-1/sqrt(fan_in), +])."""
    sizes = [INPUT_SIZE] + HIDDEN_SIZES + [1]
    params = []
    for li in range(len(sizes) - 1):
        fan_in, fan_out = sizes[li], sizes[li + 1]
        key, kw, kb = jax.random.split(key, 3)
        bound = 1.0 / jnp.sqrt(float(fan_in))
        # Stored as (in_features, out_features) so forward is x @ W + b.
        w = jax.random.uniform(kw, (fan_in, fan_out), jnp.float32, -bound, bound)
        b = jax.random.uniform(kb, (fan_out,), jnp.float32, -bound, bound)
        params.append((w, b))
    return tuple(params)


def reference_forward(x, params):
    h = x.astype(jnp.float32)
    for i, (w, b) in enumerate(params):
        h = h @ w + b
        if i < len(params) - 1:
            h = jnp.where(h > 0, h, 0.2 * h)
    return h.reshape(-1)


if __name__ == "__main__":
    key = jax.random.PRNGKey(0)
    key, kx = jax.random.split(key)

    batch = 10  # small, non-multiple-of-8 batch to exercise the padded tail
    x = jax.random.normal(kx, (batch, INPUT_SIZE), jnp.float32)

    params = init_params(jax.random.PRNGKey(0))
    prepared = prepare_params(params)

    out = lgn_discriminator_forward(x, prepared)
    out = jax.block_until_ready(out)

    ref = reference_forward(x, params)
    assert out.shape == (batch,), out.shape
    assert jnp.allclose(out, ref, atol=1e-4, rtol=1e-4), (out, ref)

    print("KERNEL_OK")
</pallas_src>

<mosaic_0001>
module attributes {stable_mosaic.version = 11 : i64} {
  func.func @_mlp_kernel(%arg0: i32, %arg1: memref<16x36xf32, #tpu.memory_space<vmem>>, %arg2: memref<36x128xf32, #tpu.memory_space<vmem>>, %arg3: memref<1x128xf32, #tpu.memory_space<vmem>>, %arg4: memref<128x128xf32, #tpu.memory_space<vmem>>, %arg5: memref<1x128xf32, #tpu.memory_space<vmem>>, %arg6: memref<128x128xf32, #tpu.memory_space<vmem>>, %arg7: memref<1x128xf32, #tpu.memory_space<vmem>>, %arg8: memref<128x128xf32, #tpu.memory_space<vmem>>, %arg9: memref<1x128xf32, #tpu.memory_space<vmem>>, %arg10: memref<128x128xf32, #tpu.memory_space<vmem>>, %arg11: memref<1x128xf32, #tpu.memory_space<vmem>>, %arg12: memref<1x128xf32, #tpu.memory_space<vmem>>, %arg13: memref<1x1xf32, #tpu.memory_space<vmem>>, %arg14: memref<16x1xf32, #tpu.memory_space<vmem>>) attributes {dimension_semantics = [#tpu.dimension_semantics<parallel>], iteration_bounds = array<i64: 1>, scalar_prefetch = 0 : i64, scratch_operands = 0 : i64, tpu.core_type = #tpu.core_type<tc>, window_params = [{transform_indices = @transform_0, window_bounds = array<i64: 16, 36>}, {pipeline_mode = #tpu.pipeline_mode<synchronous>, transform_indices = @transform_1, window_bounds = array<i64: 36, 128>}, {pipeline_mode = #tpu.pipeline_mode<synchronous>, transform_indices = @transform_2, window_bounds = array<i64: 1, 128>}, {pipeline_mode = #tpu.pipeline_mode<synchronous>, transform_indices = @transform_3, window_bounds = array<i64: 128, 128>}, {pipeline_mode = #tpu.pipeline_mode<synchronous>, transform_indices = @transform_4, window_bounds = array<i64: 1, 128>}, {pipeline_mode = #tpu.pipeline_mode<synchronous>, transform_indices = @transform_5, window_bounds = array<i64: 128, 128>}, {pipeline_mode = #tpu.pipeline_mode<synchronous>, transform_indices = @transform_6, window_bounds = array<i64: 1, 128>}, {pipeline_mode = #tpu.pipeline_mode<synchronous>, transform_indices = @transform_7, window_bounds = array<i64: 128, 128>}, {pipeline_mode = #tpu.pipeline_mode<synchronous>, transform_indices = @transform_8, window_bounds = array<i64: 1, 128>}, {pipeline_mode = #tpu.pipeline_mode<synchronous>, transform_indices = @transform_9, window_bounds = array<i64: 128, 128>}, {pipeline_mode = #tpu.pipeline_mode<synchronous>, transform_indices = @transform_10, window_bounds = array<i64: 1, 128>}, {pipeline_mode = #tpu.pipeline_mode<synchronous>, transform_indices = @transform_11, window_bounds = array<i64: 1, 128>}, {pipeline_mode = #tpu.pipeline_mode<synchronous>, transform_indices = @transform_12, window_bounds = array<i64: 1, 1>}, {transform_indices = @transform_13, window_bounds = array<i64: 16, 1>}]} {
    %c0 = arith.constant 0 : index
    %c0_0 = arith.constant 0 : index
    %0 = vector.load %arg1[%c0, %c0_0] : memref<16x36xf32, #tpu.memory_space<vmem>>, vector<16x36xf32>
    %c0_1 = arith.constant 0 : index
    %c0_2 = arith.constant 0 : index
    %1 = vector.load %arg2[%c0_1, %c0_2] : memref<36x128xf32, #tpu.memory_space<vmem>>, vector<36x128xf32>
    %cst = arith.constant dense<0.000000e+00> : vector<16x128xf32>
    %2 = tpu.matmul %0, %1, %cst {dimension_numbers = #tpu.dot_dimension_numbers<[1], [0], [0], [1], [0, 0, 1, 1], [], []>} : vector<16x36xf32>, vector<36x128xf32>, vector<16x128xf32> -> vector<16x128xf32>
    %c0_3 = arith.constant 0 : index
    %c0_4 = arith.constant 0 : index
    %3 = vector.load %arg3[%c0_3, %c0_4] : memref<1x128xf32, #tpu.memory_space<vmem>>, vector<1x128xf32>
    %4 = vector.broadcast %3 : vector<1x128xf32> to vector<16x128xf32>
    %5 = arith.addf %2, %4 : vector<16x128xf32>
    %cst_5 = arith.constant 0.000000e+00 : f32
    %6 = vector.broadcast %cst_5 : f32 to vector<16x128xf32>
    %7 = arith.cmpf ogt, %5, %6 : vector<16x128xf32>
    %cst_6 = arith.constant 2.000000e-01 : f32
    %8 = vector.broadcast %cst_6 : f32 to vector<16x128xf32>
    %9 = arith.mulf %8, %5 : vector<16x128xf32>
    %10 = arith.select %7, %5, %9 : vector<16x128xi1>, vector<16x128xf32>
    %c0_7 = arith.constant 0 : index
    %c0_8 = arith.constant 0 : index
    %11 = vector.load %arg4[%c0_7, %c0_8] : memref<128x128xf32, #tpu.memory_space<vmem>>, vector<128x128xf32>
    %cst_9 = arith.constant dense<0.000000e+00> : vector<16x128xf32>
    %12 = tpu.matmul %10, %11, %cst_9 {dimension_numbers = #tpu.dot_dimension_numbers<[1], [0], [0], [1], [0, 0, 1, 1], [], []>} : vector<16x128xf32>, vector<128x128xf32>, vector<16x128xf32> -> vector<16x128xf32>
    %c0_10 = arith.constant 0 : index
    %c0_11 = arith.constant 0 : index
    %13 = vector.load %arg5[%c0_10, %c0_11] : memref<1x128xf32, #tpu.memory_space<vmem>>, vector<1x128xf32>
    %14 = vector.broadcast %13 : vector<1x128xf32> to vector<16x128xf32>
    %15 = arith.addf %12, %14 : vector<16x128xf32>
    %cst_12 = arith.constant 0.000000e+00 : f32
    %16 = vector.broadcast %cst_12 : f32 to vector<16x128xf32>
    %17 = arith.cmpf ogt, %15, %16 : vector<16x128xf32>
    %cst_13 = arith.constant 2.000000e-01 : f32
    %18 = vector.broadcast %cst_13 : f32 to vector<16x128xf32>
    %19 = arith.mulf %18, %15 : vector<16x128xf32>
    %20 = arith.select %17, %15, %19 : vector<16x128xi1>, vector<16x128xf32>
    %c0_14 = arith.constant 0 : index
    %c0_15 = arith.constant 0 : index
    %21 = vector.load %arg6[%c0_14, %c0_15] : memref<128x128xf32, #tpu.memory_space<vmem>>, vector<128x128xf32>
    %cst_16 = arith.constant dense<0.000000e+00> : vector<16x128xf32>
    %22 = tpu.matmul %20, %21, %cst_16 {dimension_numbers = #tpu.dot_dimension_numbers<[1], [0], [0], [1], [0, 0, 1, 1], [], []>} : vector<16x128xf32>, vector<128x128xf32>, vector<16x128xf32> -> vector<16x128xf32>
    %c0_17 = arith.constant 0 : index
    %c0_18 = arith.constant 0 : index
    %23 = vector.load %arg7[%c0_17, %c0_18] : memref<1x128xf32, #tpu.memory_space<vmem>>, vector<1x128xf32>
    %24 = vector.broadcast %23 : vector<1x128xf32> to vector<16x128xf32>
    %25 = arith.addf %22, %24 : vector<16x128xf32>
    %cst_19 = arith.constant 0.000000e+00 : f32
    %26 = vector.broadcast %cst_19 : f32 to vector<16x128xf32>
    %27 = arith.cmpf ogt, %25, %26 : vector<16x128xf32>
    %cst_20 = arith.constant 2.000000e-01 : f32
    %28 = vector.broadcast %cst_20 : f32 to vector<16x128xf32>
    %29 = arith.mulf %28, %25 : vector<16x128xf32>
    %30 = arith.select %27, %25, %29 : vector<16x128xi1>, vector<16x128xf32>
    %c0_21 = arith.constant 0 : index
    %c0_22 = arith.constant 0 : index
    %31 = vector.load %arg8[%c0_21, %c0_22] : memref<128x128xf32, #tpu.memory_space<vmem>>, vector<128x128xf32>
    %cst_23 = arith.constant dense<0.000000e+00> : vector<16x128xf32>
    %32 = tpu.matmul %30, %31, %cst_23 {dimension_numbers = #tpu.dot_dimension_numbers<[1], [0], [0], [1], [0, 0, 1, 1], [], []>} : vector<16x128xf32>, vector<128x128xf32>, vector<16x128xf32> -> vector<16x128xf32>
    %c0_24 = arith.constant 0 : index
    %c0_25 = arith.constant 0 : index
    %33 = vector.load %arg9[%c0_24, %c0_25] : memref<1x128xf32, #tpu.memory_space<vmem>>, vector<1x128xf32>
    %34 = vector.broadcast %33 : vector<1x128xf32> to vector<16x128xf32>
    %35 = arith.addf %32, %34 : vector<16x128xf32>
    %cst_26 = arith.constant 0.000000e+00 : f32
    %36 = vector.broadcast %cst_26 : f32 to vector<16x128xf32>
    %37 = arith.cmpf ogt, %35, %36 : vector<16x128xf32>
    %cst_27 = arith.constant 2.000000e-01 : f32
    %38 = vector.broadcast %cst_27 : f32 to vector<16x128xf32>
    %39 = arith.mulf %38, %35 : vector<16x128xf32>
    %40 = arith.select %37, %35, %39 : vector<16x128xi1>, vector<16x128xf32>
    %c0_28 = arith.constant 0 : index
    %c0_29 = arith.constant 0 : index
    %41 = vector.load %arg10[%c0_28, %c0_29] : memref<128x128xf32, #tpu.memory_space<vmem>>, vector<128x128xf32>
    %cst_30 = arith.constant dense<0.000000e+00> : vector<16x128xf32>
    %42 = tpu.matmul %40, %41, %cst_30 {dimension_numbers = #tpu.dot_dimension_numbers<[1], [0], [0], [1], [0, 0, 1, 1], [], []>} : vector<16x128xf32>, vector<128x128xf32>, vector<16x128xf32> -> vector<16x128xf32>
    %c0_31 = arith.constant 0 : index
    %c0_32 = arith.constant 0 : index
    %43 = vector.load %arg11[%c0_31, %c0_32] : memref<1x128xf32, #tpu.memory_space<vmem>>, vector<1x128xf32>
    %44 = vector.broadcast %43 : vector<1x128xf32> to vector<16x128xf32>
    %45 = arith.addf %42, %44 : vector<16x128xf32>
    %cst_33 = arith.constant 0.000000e+00 : f32
    %46 = vector.broadcast %cst_33 : f32 to vector<16x128xf32>
    %47 = arith.cmpf ogt, %45, %46 : vector<16x128xf32>
    %cst_34 = arith.constant 2.000000e-01 : f32
    %48 = vector.broadcast %cst_34 : f32 to vector<16x128xf32>
    %49 = arith.mulf %48, %45 : vector<16x128xf32>
    %50 = arith.select %47, %45, %49 : vector<16x128xi1>, vector<16x128xf32>
    %c0_35 = arith.constant 0 : index
    %c0_36 = arith.constant 0 : index
    %51 = vector.load %arg12[%c0_35, %c0_36] : memref<1x128xf32, #tpu.memory_space<vmem>>, vector<1x128xf32>
    %52 = vector.broadcast %51 : vector<1x128xf32> to vector<16x128xf32>
    %53 = arith.mulf %50, %52 : vector<16x128xf32>
    %cst_37 = arith.constant dense<0.000000e+00> : vector<16xf32>
    %54 = vector.multi_reduction <add>, %53, %cst_37 [1] : vector<16x128xf32> to vector<16xf32>
    %55 = vector.shape_cast %54 : vector<16xf32> to vector<16x1xf32>
    %c0_38 = arith.constant 0 : index
    %c0_39 = arith.constant 0 : index
    %56 = vector.load %arg13[%c0_38, %c0_39] : memref<1x1xf32, #tpu.memory_space<vmem>>, vector<1x1xf32>
    %57 = vector.broadcast %56 : vector<1x1xf32> to vector<16x1xf32>
    %58 = arith.addf %55, %57 : vector<16x1xf32>
    %c0_40 = arith.constant 0 : index
    %c0_41 = arith.constant 0 : index
    %59 = vector.load %arg14[%c0_40, %c0_41] : memref<16x1xf32, #tpu.memory_space<vmem>>, vector<16x1xf32>
    tpu.vector_store %arg14[%c0_40, %c0_41], %58 {strides = array<i32>} : memref<16x1xf32, #tpu.memory_space<vmem>>, vector<16x1xf32>,
    return
  }
  func.func @transform_0(%arg0: i32) -> (i32, i32) {
    %c0_i32 = arith.constant 0 : i32
    %c0_i32_0 = arith.constant 0 : i32
    return %arg0, %c0_i32 : i32, i32
  }
  func.func @transform_1(%arg0: i32) -> (i32, i32) {
    %c0_i32 = arith.constant 0 : i32
    %c0_i32_0 = arith.constant 0 : i32
    %c0_i32_1 = arith.constant 0 : i32
    return %c0_i32, %c0_i32_0 : i32, i32
  }
  func.func @transform_2(%arg0: i32) -> (i32, i32) {
    %c0_i32 = arith.constant 0 : i32
    %c0_i32_0 = arith.constant 0 : i32
    %c0_i32_1 = arith.constant 0 : i32
    return %c0_i32, %c0_i32_0 : i32, i32
  }
  func.func @transform_3(%arg0: i32) -> (i32, i32) {
    %c0_i32 = arith.constant 0 : i32
    %c0_i32_0 = arith.constant 0 : i32
    %c0_i32_1 = arith.constant 0 : i32
    return %c0_i32, %c0_i32_0 : i32, i32
  }
  func.func @transform_4(%arg0: i32) -> (i32, i32) {
    %c0_i32 = arith.constant 0 : i32
    %c0_i32_0 = arith.constant 0 : i32
    %c0_i32_1 = arith.constant 0 : i32
    return %c0_i32, %c0_i32_0 : i32, i32
  }
  func.func @transform_5(%arg0: i32) -> (i32, i32) {
    %c0_i32 = arith.constant 0 : i32
    %c0_i32_0 = arith.constant 0 : i32
    %c0_i32_1 = arith.constant 0 : i32
    return %c0_i32, %c0_i32_0 : i32, i32
  }
  func.func @transform_6(%arg0: i32) -> (i32, i32) {
    %c0_i32 = arith.constant 0 : i32
    %c0_i32_0 = arith.constant 0 : i32
    %c0_i32_1 = arith.constant 0 : i32
    return %c0_i32, %c0_i32_0 : i32, i32
  }
  func.func @transform_7(%arg0: i32) -> (i32, i32) {
    %c0_i32 = arith.constant 0 : i32
    %c0_i32_0 = arith.constant 0 : i32
    %c0_i32_1 = arith.constant 0 : i32
    return %c0_i32, %c0_i32_0 : i32, i32
  }
  func.func @transform_8(%arg0: i32) -> (i32, i32) {
    %c0_i32 = arith.constant 0 : i32
    %c0_i32_0 = arith.constant 0 : i32
    %c0_i32_1 = arith.constant 0 : i32
    return %c0_i32, %c0_i32_0 : i32, i32
  }
  func.func @transform_9(%arg0: i32) -> (i32, i32) {
    %c0_i32 = arith.constant 0 : i32
    %c0_i32_0 = arith.constant 0 : i32
    %c0_i32_1 = arith.constant 0 : i32
    return %c0_i32, %c0_i32_0 : i32, i32
  }
  func.func @transform_10(%arg0: i32) -> (i32, i32) {
    %c0_i32 = arith.constant 0 : i32
    %c0_i32_0 = arith.constant 0 : i32
    %c0_i32_1 = arith.constant 0 : i32
    return %c0_i32, %c0_i32_0 : i32, i32
  }
  func.func @transform_11(%arg0: i32) -> (i32, i32) {
    %c0_i32 = arith.constant 0 : i32
    %c0_i32_0 = arith.constant 0 : i32
    %c0_i32_1 = arith.constant 0 : i32
    return %c0_i32, %c0_i32_0 : i32, i32
  }
  func.func @transform_12(%arg0: i32) -> (i32, i32) {
    %c0_i32 = arith.constant 0 : i32
    %c0_i32_0 = arith.constant 0 : i32
    %c0_i32_1 = arith.constant 0 : i32
    return %c0_i32, %c0_i32_0 : i32, i32
  }
  func.func @transform_13(%arg0: i32) -> (i32, i32) {
    %c0_i32 = arith.constant 0 : i32
    %c0_i32_0 = arith.constant 0 : i32
    return %arg0, %c0_i32 : i32, i32
  }
}

</mosaic_0001>

<llo_original>
// kernel: lgn_discriminator_forward.1
$region0: #{lgn_discriminator_forward.1}
  #allocation0 [shape = 'u32[]', space=smem, size = 0x4, offset = 0x4, fixed_abs, tag = 'smem constant byte address 0x4 - core index']
  #allocation1 [shape = 'u32[144,128]{1,0:T(1,128)}', space=vmem, size = 0x12000, scoped, tag = 'internal scratch']
  #allocation2 [shape = 'f32[1,1]{1,0:T(1,128)S(1)}', space=vmem, size = 0x200, scoped, tag = 'scoped memory for lgn_discriminator_forward.1']
  %s0 = inlined_call_operand.vmem [shape: f32[16,36], index: 0, kind: input, shape index: {}]
  %s1 = inlined_call_operand.hbm [shape: f32[36,128], index: 1, kind: input, shape index: {}]
  %s2 = inlined_call_operand.vmem [shape: f32[1,128], index: 2, kind: input, shape index: {}]
  %s3 = inlined_call_operand.hbm [shape: f32[128,128], index: 3, kind: input, shape index: {}]
  %s4 = inlined_call_operand.vmem [shape: f32[1,128], index: 4, kind: input, shape index: {}]
  %s5 = inlined_call_operand.hbm [shape: f32[128,128], index: 5, kind: input, shape index: {}]
  %s6 = inlined_call_operand.vmem [shape: f32[1,128], index: 6, kind: input, shape index: {}]
  %s7 = inlined_call_operand.hbm [shape: f32[128,128], index: 7, kind: input, shape index: {}]
  %s8 = inlined_call_operand.vmem [shape: f32[1,128], index: 8, kind: input, shape index: {}]
  %s9 = inlined_call_operand.hbm [shape: f32[128,128], index: 9, kind: input, shape index: {}]
  %s10 = inlined_call_operand.vmem [shape: f32[1,128], index: 10, kind: input, shape index: {}]
  %s11 = inlined_call_operand.vmem [shape: f32[1,128], index: 11, kind: input, shape index: {}]
  %s12 = inlined_call_operand.<no memory space> [shape: f32[1,1], index: 12, kind: input, shape index: {}]
  %s13 = inlined_call_operand.vmem [shape: f32[16,1], index: 13, kind: output, shape index: {}]
  %s14 = sld [smem:[#allocation0]]
  $region82: #{lgn_discriminator_forward.1} parent=0
    _
  %s16 = ssub.s32 1, %s14
  %s17 = scalar_select 0, %s16, %s14
  %v18 = vstv %s12
  %19 = vst [vmem:[#allocation2] sm:$0x1] %v18
  $region1: #{lgn_discriminator_forward.1} parent=0
    #allocation3 [shape = 'u8[20480]{0}', space=vmem, size = 0x5000, scoped, tag = 'input window, operand 1, single buffered']
    #allocation4 [shape = 's32[1]{0}', space=sflag, size = 0x4, scoped, tag = 'scoped memory for lgn_discriminator_forward.1']
    #allocation5 [shape = 'u8[65536]{0}', space=vmem, size = 0x10000, scoped, tag = 'input window, operand 3, single buffered']
    #allocation6 [shape = 's32[1]{0}', space=sflag, size = 0x4, scoped, tag = 'scoped memory for lgn_discriminator_forward.1']
    #allocation7 [shape = 'u8[65536]{0}', space=vmem, size = 0x10000, scoped, tag = 'input window, operand 5, single buffered']
    #allocation8 [shape = 'u8[65536]{0}', space=vmem, size = 0x10000, scoped, tag = 'input window, operand 7, single buffered']
    #allocation9 [shape = 's32[1]{0}', space=sflag, size = 0x4, scoped, tag = 'scoped memory for lgn_discriminator_forward.1']
    #allocation10 [shape = 'u8[65536]{0}', space=vmem, size = 0x10000, scoped, tag = 'input window, operand 9, single buffered']
    %20 = vsyncpa [#allocation4], 0
    %21 = vsyncpa [#allocation6], 0
    %22 = vsyncpa [#allocation9], 0
    // Predicated region
    $region2: #{lgn_discriminator_forward.1} parent=1 // pred_check
      _
    $region3: #{lgn_discriminator_forward.1} parent=1 // pred_check_branch
      %24 = sbr.rel (0) target = $region5
    $region4: #{lgn_discriminator_forward.1} parent=1 // pred_region
      _
    $region5: #{lgn_discriminator_forward.1} parent=1 // pred_fallthru
      _
    // Predicated region
    $region6: #{lgn_discriminator_forward.1} parent=1 // pred_check
      _
    $region7: #{lgn_discriminator_forward.1} parent=1 // pred_check_branch
      %26 = sbr.rel (0) target = $region9
    $region8: #{lgn_discriminator_forward.1} parent=1 // pred_region
      %s28 = ssub.s32 640, 640
      %29 = vsyncadd [#allocation4], %s28
      %s30 = sshll.u32 [#allocation3], 4
      %s31 = int_to_ptr.vmem [resolvable:$true] %s30
      %36 = dma.hbm_to_vmem [thread:$0]  %s1, 640, %s31, [#allocation4], 128, 128, 8
    $region9: #{lgn_discriminator_forward.1} parent=1 // pred_fallthru
      _
    // Predicated region
    $region10: #{lgn_discriminator_forward.1} parent=1 // pred_check
      _
    $region11: #{lgn_discriminator_forward.1} parent=1 // pred_check_branch
      %38 = sbr.rel (0) target = $region13
    $region12: #{lgn_discriminator_forward.1} parent=1 // pred_region
      _
    $region13: #{lgn_discriminator_forward.1} parent=1 // pred_fallthru
      _
    // Predicated region
    $region14: #{lgn_discriminator_forward.1} parent=1 // pred_check
      _
    $region15: #{lgn_discriminator_forward.1} parent=1 // pred_check_branch
      %40 = sbr.rel (0) target = $region17
    $region16: #{lgn_discriminator_forward.1} parent=1 // pred_region
      %s42 = ssub.s32 2048, 2048
      %43 = vsyncadd [#allocation6], %s42
      %s44 = sshll.u32 [#allocation5], 4
      %s45 = int_to_ptr.vmem [resolvable:$true] %s44
      %50 = dma.hbm_to_vmem [thread:$0]  %s3, 2048, %s45, [#allocation6], 128, 128, 8
    $region17: #{lgn_discriminator_forward.1} parent=1 // pred_fallthru
      _
    // Predicated region
    $region18: #{lgn_discriminator_forward.1} parent=1 // pred_check
      _
    $region19: #{lgn_discriminator_forward.1} parent=1 // pred_check_branch
      %52 = sbr.rel (0) target = $region21
    $region20: #{lgn_discriminator_forward.1} parent=1 // pred_region
      _
    $region21: #{lgn_discriminator_forward.1} parent=1 // pred_fallthru
      _
    // Predicated region
    $region22: #{lgn_discriminator_forward.1} parent=1 // pred_check
      _
    $region23: #{lgn_discriminator_forward.1} parent=1 // pred_check_branch
      %54 = sbr.rel (0) target = $region25
    $region24: #{lgn_discriminator_forward.1} parent=1 // pred_region
      %s56 = ssub.s32 2048, 2048
      %57 = vsyncadd [#allocation6], %s56
      %s58 = sshll.u32 [#allocation7], 4
      %s59 = int_to_ptr.vmem [resolvable:$true] %s58
      %64 = dma.hbm_to_vmem [thread:$0]  %s5, 2048, %s59, [#allocation6], 128, 128, 8
    $region25: #{lgn_discriminator_forward.1} parent=1 // pred_fallthru
      _
    // Predicated region
    $region26: #{lgn_discriminator_forward.1} parent=1 // pred_check
      _
    $region27: #{lgn_discriminator_forward.1} parent=1 // pred_check_branch
      %66 = sbr.rel (0) target = $region29
    $region28: #{lgn_discriminator_forward.1} parent=1 // pred_region
      _
    $region29: #{lgn_discriminator_forward.1} parent=1 // pred_fallthru
      _
    // Predicated region
    $region30: #{lgn_discriminator_forward.1} parent=1 // pred_check
      _
    $region31: #{lgn_discriminator_forward.1} parent=1 // pred_check_branch
      %68 = sbr.rel (0) target = $region33
    $region32: #{lgn_discriminator_forward.1} parent=1 // pred_region
      %s70 = ssub.s32 2048, 2048
      %71 = vsyncadd [#allocation9], %s70
      %s72 = sshll.u32 [#allocation8], 4
      %s73 = int_to_ptr.vmem [resolvable:$true] %s72
      %78 = dma.hbm_to_vmem [thread:$0]  %s7, 2048, %s73, [#allocation9], 128, 128, 8
    $region33: #{lgn_discriminator_forward.1} parent=1 // pred_fallthru
      _
    // Predicated region
    $region34: #{lgn_discriminator_forward.1} parent=1 // pred_check
      _
    $region35: #{lgn_discriminator_forward.1} parent=1 // pred_check_branch
      %80 = sbr.rel (0) target = $region37
    $region36: #{lgn_discriminator_forward.1} parent=1 // pred_region
      _
    $region37: #{lgn_discriminator_forward.1} parent=1 // pred_fallthru
      _
    // Predicated region
    $region38: #{lgn_discriminator_forward.1} parent=1 // pred_check
      _
    $region39: #{lgn_discriminator_forward.1} parent=1 // pred_check_branch
      %82 = sbr.rel (0) target = $region41
    $region40: #{lgn_discriminator_forward.1} parent=1 // pred_region
      %s84 = ssub.s32 2048, 2048
      %85 = vsyncadd [#allocation9], %s84
      %s86 = sshll.u32 [#allocation10], 4
      %s87 = int_to_ptr.vmem [resolvable:$true] %s86
      %92 = dma.hbm_to_vmem [thread:$0]  %s9, 2048, %s87, [#allocation9], 128, 128, 8
    $region41: #{lgn_discriminator_forward.1} parent=1 // pred_fallthru
      _
    // Predicated region
    $region42: #{lgn_discriminator_forward.1} parent=1 // pred_check
      _
    $region43: #{lgn_discriminator_forward.1} parent=1 // pred_check_branch
      %94 = sbr.rel (0) target = $region45
    $region44: #{lgn_discriminator_forward.1} parent=1 // pred_region
      _
    $region45: #{lgn_discriminator_forward.1} parent=1 // pred_fallthru
      _
    // Predicated region
    $region46: #{lgn_discriminator_forward.1} parent=1 // pred_check
      _
    $region47: #{lgn_discriminator_forward.1} parent=1 // pred_check_branch
      %96 = sbr.rel (0) target = $region49
    $region48: #{lgn_discriminator_forward.1} parent=1 // pred_region
      _
    $region49: #{lgn_discriminator_forward.1} parent=1 // pred_fallthru
      _
    // Predicated region
    $region50: #{lgn_discriminator_forward.1} parent=1 // pred_check
      _
    $region51: #{lgn_discriminator_forward.1} parent=1 // pred_check_branch
      %98 = sbr.rel (0) target = $region53
    $region52: #{lgn_discriminator_forward.1} parent=1 // pred_region
      _
    $region53: #{lgn_discriminator_forward.1} parent=1 // pred_fallthru
      _
    // Predicated region
    $region54: #{lgn_discriminator_forward.1} parent=1 // pred_check
      _
    $region55: #{lgn_discriminator_forward.1} parent=1 // pred_check_branch
      %100 = sbr.rel (0) target = $region57
    $region56: #{lgn_discriminator_forward.1} parent=1 // pred_region
      %101 = dma.done [#allocation4], 640
    $region57: #{lgn_discriminator_forward.1} parent=1 // pred_fallthru
      _
    // Predicated region
    $region58: #{lgn_discriminator_forward.1} parent=1 // pred_check
      _
    $region59: #{lgn_discriminator_forward.1} parent=1 // pred_check_branch
      %103 = sbr.rel (0) target = $region61
    $region60: #{lgn_discriminator_forward.1} parent=1 // pred_region
      %104 = dma.done [#allocation6], 2048
    $region61: #{lgn_discriminator_forward.1} parent=1 // pred_fallthru
      _
    // Predicated region
    $region62: #{lgn_discriminator_forward.1} parent=1 // pred_check
      _
    $region63: #{lgn_discriminator_forward.1} parent=1 // pred_check_branch
      %106 = sbr.rel (0) target = $region65
    $region64: #{lgn_discriminator_forward.1} parent=1 // pred_region
      %107 = dma.done [#allocation6], 2048
    $region65: #{lgn_discriminator_forward.1} parent=1 // pred_fallthru
      _
    // Predicated region
    $region66: #{lgn_discriminator_forward.1} parent=1 // pred_check
      _
    $region67: #{lgn_discriminator_forward.1} parent=1 // pred_check_branch
      %109 = sbr.rel (0) target = $region69
    $region68: #{lgn_discriminator_forward.1} parent=1 // pred_region
      %110 = dma.done [#allocation9], 2048
    $region69: #{lgn_discriminator_forward.1} parent=1 // pred_fallthru
      _
    // Predicated region
    $region70: #{lgn_discriminator_forward.1} parent=1 // pred_check
      _
    $region71: #{lgn_discriminator_forward.1} parent=1 // pred_check_branch
      %112 = sbr.rel (0) target = $region73
    $region72: #{lgn_discriminator_forward.1} parent=1 // pred_region
      %113 = dma.done [#allocation9], 2048
    $region73: #{lgn_discriminator_forward.1} parent=1 // pred_fallthru
      _
    %v114 = vld [vmem:[%s0] sm:$0xff]
    %v115 = vld [vmem:[%s0 + $0x8] sm:$0xff]
    %v116 = vld [vmem:[#allocation3] sm:$0xff]
    %v117 = vld [vmem:[#allocation3 + $0x8] sm:$0xff]
    %v118 = vld [vmem:[#allocation3 + $0x10] sm:$0xff]
    %v119 = vld [vmem:[#allocation3 + $0x18] sm:$0xff]
    %v120 = vld [vmem:[#allocation3 + $0x20] sm:$0xf]
    %v121 = vld [vmem:[%s2] sm:$0x1]
    %v123 = vlaneseq
    %v124 = vshrl.u32 %v123, 7
    %v125 = vsub.s32 0, %v124
    %v126 = vrot.slane %v121, %v125
    %vm128 = vcmask 293888
    %v130 = vsel %vm128, %v114, 0
    %v133 = vsel %vm128, %v115, 0
    %vm135 = vcmask 1043456
    %v137 = vsel %vm135, %v120, 0
    %139 = vmatprep.subr.mxu0 0.0
    %140 = vmatpush1.msra.mxu0 0.0
    %141 = vmatprep.subr.mxu0 0.0
    %142 = vmatpush1.msra.mxu0 0.0
    %143 = vmatprep.subr.mxu0 0.0
    %144 = vmatpush1.msra.mxu0 0.0
    %145 = vmatprep.subr.mxu0 0.0
    %146 = vmatpush1.msra.mxu0 0.0
    %147 = vmatprep.subr.mxu0 0.0
    %148 = vmatpush1.msra.mxu0 0.0
    %149 = vmatprep.subr.mxu0 0.0
    %150 = vmatpush1.msra.mxu0 0.0
    %151 = vmatprep.subr.mxu0 0.0
    %152 = vmatpush1.msra.mxu0 0.0
    %153 = vmatprep.subr.mxu0 0.0
    %154 = vmatpush1.msra.mxu0 0.0
    %155 = vmatprep.subr.mxu0 0.0
    %156 = vmatpush1.msra.mxu0 0.0
    %157 = vmatprep.subr.mxu0 0.0
    %158 = vmatpush1.msra.mxu0 0.0
    %159 = vmatprep.subr.mxu0 0.0
    %160 = vmatpush1.msra.mxu0 0.0
    %161 = vmatprep.subr.mxu0 0.0
    %162 = vmatpush1.msra.mxu0 %v137
    %163 = vmatprep.subr.mxu0 0.0
    %164 = vmatpush1.msra.mxu0 %v119
    %165 = vmatprep.subr.mxu0 0.0
    %166 = vmatpush1.msra.mxu0 %v118
    %167 = vmatprep.subr.mxu0 0.0
    %168 = vmatpush1.msra.mxu0 %v117
    %169 = vmatprep.subr.mxu0 0.0
    %170 = vmatpush1.msra.mxu0 %v116
    %171 = vmatprep.subr.mxu0 0.0
    %172 = vmatpush2.msra.mxu0 0.0
    %173 = vmatprep.subr.mxu0 0.0
    %174 = vmatpush2.msra.mxu0 0.0
    %175 = vmatprep.subr.mxu0 0.0
    %176 = vmatpush2.msra.mxu0 0.0
    %177 = vmatprep.subr.mxu0 0.0
    %178 = vmatpush2.msra.mxu0 0.0
    %179 = vmatprep.subr.mxu0 0.0
    %180 = vmatpush2.msra.mxu0 0.0
    %181 = vmatprep.subr.mxu0 0.0
    %182 = vmatpush2.msra.mxu0 0.0
    %183 = vmatprep.subr.mxu0 0.0
    %184 = vmatpush2.msra.mxu0 0.0
    %185 = vmatprep.subr.mxu0 0.0
    %186 = vmatpush2.msra.mxu0 0.0
    %187 = vmatprep.subr.mxu0 0.0
    %188 = vmatpush2.msra.mxu0 0.0
    %189 = vmatprep.subr.mxu0 0.0
    %190 = vmatpush2.msra.mxu0 0.0
    %191 = vmatprep.subr.mxu0 0.0
    %192 = vmatpush2.msra.mxu0 0.0
    %193 = vmatprep.subr.mxu0 0.0
    %194 = vmatpush2.msra.mxu0 0.0
    %195 = vmatprep.subr.mxu0 0.0
    %196 = vmatpush2.msra.mxu0 0.0
    %197 = vmatprep.subr.mxu0 0.0
    %198 = vmatpush2.msra.mxu0 0.0
    %199 = vmatprep.subr.mxu0 0.0
    %200 = vmatpush2.msra.mxu0 0.0
    %201 = vmatprep.subr.mxu0 0.0
    %202 = vmatpush2.msra.mxu0 0.0
    %203 = vmatprep.mubr.f32.mxu0 0.0
    %204 = vmatmul.mubr.f32.gmra.mxu0 %v130
    %v205 = vpop.f32.mrf.mxu0
    %v206 = vadd.f32 %v126, %v205
    %v207 = vpop.f32.mrf.mxu0
    %208 = vmatprep.mubr.f32.mxu0 0.0
    %209 = vmatmul.mubr.f32.gmra.mxu0 %v133
    %v210 = vpop.f32.mrf.mxu0
    %v211 = vadd.f32 %v126, %v210
    %v212 = vpop.f32.mrf.mxu0
    %213 = vdwg.mxu0
    %vm214 = vcmp.gt.f32.partialorder %v206, 0.0
    %vm215 = vcmp.gt.f32.partialorder %v211, 0.0
    %v216 = vmul.f32 %v206, 0.2
    %v217 = vmul.f32 %v211, 0.2
    %v218 = vsel %vm214, %v206, %v216
    %v219 = vsel %vm215, %v211, %v217
    %v220 = vld [vmem:[#allocation5] sm:$0xff]
    %v221 = vld [vmem:[#allocation5 + $0x8] sm:$0xff]
    %v222 = vld [vmem:[#allocation5 + $0x10] sm:$0xff]
    %v223 = vld [vmem:[#allocation5 + $0x18] sm:$0xff]
    %v224 = vld [vmem:[#allocation5 + $0x20] sm:$0xff]
    %v225 = vld [vmem:[#allocation5 + $0x28] sm:$0xff]
    %v226 = vld [vmem:[#allocation5 + $0x30] sm:$0xff]
    %v227 = vld [vmem:[#allocation5 + $0x38] sm:$0xff]
    %v228 = vld [vmem:[#allocation5 + $0x40] sm:$0xff]
    %v229 = vld [vmem:[#allocation5 + $0x48] sm:$0xff]
    %v230 = vld [vmem:[#allocation5 + $0x50] sm:$0xff]
    %v231 = vld [vmem:[#allocation5 + $0x58] sm:$0xff]
    %v232 = vld [vmem:[#allocation5 + $0x60] sm:$0xff]
    %v233 = vld [vmem:[#allocation5 + $0x68] sm:$0xff]
    %v234 = vld [vmem:[#allocation5 + $0x70] sm:$0xff]
    %v235 = vld [vmem:[#allocation5 + $0x78] sm:$0xff]
    %v236 = vld [vmem:[%s4] sm:$0x1]
    %v238 = vlaneseq
    %v239 = vshrl.u32 %v238, 7
    %v240 = vsub.s32 0, %v239
    %v241 = vrot.slane %v236, %v240
    %243 = vmatprep.subr.mxu0 0.0
    %244 = vmatpush1.msra.mxu0 %v235
    %245 = vmatprep.subr.mxu0 0.0
    %246 = vmatpush1.msra.mxu0 %v234
    %247 = vmatprep.subr.mxu0 0.0
    %248 = vmatpush1.msra.mxu0 %v233
    %249 = vmatprep.subr.mxu0 0.0
    %250 = vmatpush1.msra.mxu0 %v232
    %251 = vmatprep.subr.mxu0 0.0
    %252 = vmatpush1.msra.mxu0 %v231
    %253 = vmatprep.subr.mxu0 0.0
    %254 = vmatpush1.msra.mxu0 %v230
    %255 = vmatprep.subr.mxu0 0.0
    %256 = vmatpush1.msra.mxu0 %v229
    %257 = vmatprep.subr.mxu0 0.0
    %258 = vmatpush1.msra.mxu0 %v228
    %259 = vmatprep.subr.mxu0 0.0
    %260 = vmatpush1.msra.mxu0 %v227
    %261 = vmatprep.subr.mxu0 0.0
    %262 = vmatpush1.msra.mxu0 %v226
    %263 = vmatprep.subr.mxu0 0.0
    %264 = vmatpush1.msra.mxu0 %v225
    %265 = vmatprep.subr.mxu0 0.0
    %266 = vmatpush1.msra.mxu0 %v224
    %267 = vmatprep.subr.mxu0 0.0
    %268 = vmatpush1.msra.mxu0 %v223
    %269 = vmatprep.subr.mxu0 0.0
    %270 = vmatpush1.msra.mxu0 %v222
    %271 = vmatprep.subr.mxu0 0.0
    %272 = vmatpush1.msra.mxu0 %v221
    %273 = vmatprep.subr.mxu0 0.0
    %274 = vmatpush1.msra.mxu0 %v220
    %275 = vmatprep.subr.mxu0 0.0
    %276 = vmatpush2.msra.mxu0 0.0
    %277 = vmatprep.subr.mxu0 0.0
    %278 = vmatpush2.msra.mxu0 0.0
    %279 = vmatprep.subr.mxu0 0.0
    %280 = vmatpush2.msra.mxu0 0.0
    %281 = vmatprep.subr.mxu0 0.0
    %282 = vmatpush2.msra.mxu0 0.0
    %283 = vmatprep.subr.mxu0 0.0
    %284 = vmatpush2.msra.mxu0 0.0
    %285 = vmatprep.subr.mxu0 0.0
    %286 = vmatpush2.msra.mxu0 0.0
    %287 = vmatprep.subr.mxu0 0.0
    %288 = vmatpush2.msra.mxu0 0.0
    %289 = vmatprep.subr.mxu0 0.0
    %290 = vmatpush2.msra.mxu0 0.0
    %291 = vmatprep.subr.mxu0 0.0
    %292 = vmatpush2.msra.mxu0 0.0
    %293 = vmatprep.subr.mxu0 0.0
    %294 = vmatpush2.msra.mxu0 0.0
    %295 = vmatprep.subr.mxu0 0.0
    %296 = vmatpush2.msra.mxu0 0.0
    %297 = vmatprep.subr.mxu0 0.0
    %298 = vmatpush2.msra.mxu0 0.0
    %299 = vmatprep.subr.mxu0 0.0
    %300 = vmatpush2.msra.mxu0 0.0
    %301 = vmatprep.subr.mxu0 0.0
    %302 = vmatpush2.msra.mxu0 0.0
    %303 = vmatprep.subr.mxu0 0.0
    %304 = vmatpush2.msra.mxu0 0.0
    %305 = vmatprep.subr.mxu0 0.0
    %306 = vmatpush2.msra.mxu0 0.0
    %307 = vmatprep.mubr.f32.mxu0 0.0
    %308 = vmatmul.mubr.f32.gmra.mxu0 %v218
    %v309 = vpop.f32.mrf.mxu0
    %v310 = vadd.f32 %v241, %v309
    %v311 = vpop.f32.mrf.mxu0
    %312 = vmatprep.mubr.f32.mxu0 0.0
    %313 = vmatmul.mubr.f32.gmra.mxu0 %v219
    %v314 = vpop.f32.mrf.mxu0
    %v315 = vadd.f32 %v241, %v314
    %v316 = vpop.f32.mrf.mxu0
    %317 = vdwg.mxu0
    %vm318 = vcmp.gt.f32.partialorder %v310, 0.0
    %vm319 = vcmp.gt.f32.partialorder %v315, 0.0
    %v320 = vmul.f32 %v310, 0.2
    %v321 = vmul.f32 %v315, 0.2
    %v322 = vsel %vm318, %v310, %v320
    %v323 = vsel %vm319, %v315, %v321
    %v324 = vld [vmem:[#allocation7] sm:$0xff]
    %v325 = vld [vmem:[#allocation7 + $0x8] sm:$0xff]
    %v326 = vld [vmem:[#allocation7 + $0x10] sm:$0xff]
    %v327 = vld [vmem:[#allocation7 + $0x18] sm:$0xff]
    %v328 = vld [vmem:[#allocation7 + $0x20] sm:$0xff]
    %v329 = vld [vmem:[#allocation7 + $0x28] sm:$0xff]
    %v330 = vld [vmem:[#allocation7 + $0x30] sm:$0xff]
    %v331 = vld [vmem:[#allocation7 + $0x38] sm:$0xff]
    %v332 = vld [vmem:[#allocation7 + $0x40] sm:$0xff]
    %v333 = vld [vmem:[#allocation7 + $0x48] sm:$0xff]
    %v334 = vld [vmem:[#allocation7 + $0x50] sm:$0xff]
    %v335 = vld [vmem:[#allocation7 + $0x58] sm:$0xff]
    %v336 = vld [vmem:[#allocation7 + $0x60] sm:$0xff]
    %v337 = vld [vmem:[#allocation7 + $0x68] sm:$0xff]
    %v338 = vld [vmem:[#allocation7 + $0x70] sm:$0xff]
    %v339 = vld [vmem:[#allocation7 + $0x78] sm:$0xff]
    %v340 = vld [vmem:[%s6] sm:$0x1]
    %v342 = vlaneseq
    %v343 = vshrl.u32 %v342, 7
    %v344 = vsub.s32 0, %v343
    %v345 = vrot.slane %v340, %v344
    %347 = vmatprep.subr.mxu0 0.0
    %348 = vmatpush1.msra.mxu0 %v339
    %349 = vmatprep.subr.mxu0 0.0
    %350 = vmatpush1.msra.mxu0 %v338
    %351 = vmatprep.subr.mxu0 0.0
    %352 = vmatpush1.msra.mxu0 %v337
    %353 = vmatprep.subr.mxu0 0.0
    %354 = vmatpush1.msra.mxu0 %v336
    %355 = vmatprep.subr.mxu0 0.0
    %356 = vmatpush1.msra.mxu0 %v335
    %357 = vmatprep.subr.mxu0 0.0
    %358 = vmatpush1.msra.mxu0 %v334
    %359 = vmatprep.subr.mxu0 0.0
    %360 = vmatpush1.msra.mxu0 %v333
    %361 = vmatprep.subr.mxu0 0.0
    %362 = vmatpush1.msra.mxu0 %v332
    %363 = vmatprep.subr.mxu0 0.0
    %364 = vmatpush1.msra.mxu0 %v331
    %365 = vmatprep.subr.mxu0 0.0
    %366 = vmatpush1.msra.mxu0 %v330
    %367 = vmatprep.subr.mxu0 0.0
    %368 = vmatpush1.msra.mxu0 %v329
    %369 = vmatprep.subr.mxu0 0.0
    %370 = vmatpush1.msra.mxu0 %v328
    %371 = vmatprep.subr.mxu0 0.0
    %372 = vmatpush1.msra.mxu0 %v327
    %373 = vmatprep.subr.mxu0 0.0
    %374 = vmatpush1.msra.mxu0 %v326
    %375 = vmatprep.subr.mxu0 0.0
    %376 = vmatpush1.msra.mxu0 %v325
    %377 = vmatprep.subr.mxu0 0.0
    %378 = vmatpush1.msra.mxu0 %v324
    %379 = vmatprep.subr.mxu0 0.0
    %380 = vmatpush2.msra.mxu0 0.0
    %381 = vmatprep.subr.mxu0 0.0
    %382 = vmatpush2.msra.mxu0 0.0
    %383 = vmatprep.subr.mxu0 0.0
    %384 = vmatpush2.msra.mxu0 0.0
    %385 = vmatprep.subr.mxu0 0.0
    %386 = vmatpush2.msra.mxu0 0.0
    %387 = vmatprep.subr.mxu0 0.0
    %388 = vmatpush2.msra.mxu0 0.0
    %389 = vmatprep.subr.mxu0 0.0
    %390 = vmatpush2.msra.mxu0 0.0
    %391 = vmatprep.subr.mxu0 0.0
    %392 = vmatpush2.msra.mxu0 0.0
    %393 = vmatprep.subr.mxu0 0.0
    %394 = vmatpush2.msra.mxu0 0.0
    %395 = vmatprep.subr.mxu0 0.0
    %396 = vmatpush2.msra.mxu0 0.0
    %397 = vmatprep.subr.mxu0 0.0
    %398 = vmatpush2.msra.mxu0 0.0
    %399 = vmatprep.subr.mxu0 0.0
    %400 = vmatpush2.msra.mxu0 0.0
    %401 = vmatprep.subr.mxu0 0.0
    %402 = vmatpush2.msra.mxu0 0.0
    %403 = vmatprep.subr.mxu0 0.0
    %404 = vmatpush2.msra.mxu0 0.0
    %405 = vmatprep.subr.mxu0 0.0
    %406 = vmatpush2.msra.mxu0 0.0
    %407 = vmatprep.subr.mxu0 0.0
    %408 = vmatpush2.msra.mxu0 0.0
    %409 = vmatprep.subr.mxu0 0.0
    %410 = vmatpush2.msra.mxu0 0.0
    %411 = vmatprep.mubr.f32.mxu0 0.0
    %412 = vmatmul.mubr.f32.gmra.mxu0 %v322
    %v413 = vpop.f32.mrf.mxu0
    %v414 = vadd.f32 %v345, %v413
    %v415 = vpop.f32.mrf.mxu0
    %416 = vmatprep.mubr.f32.mxu0 0.0
    %417 = vmatmul.mubr.f32.gmra.mxu0 %v323
    %v418 = vpop.f32.mrf.mxu0
    %v419 = vadd.f32 %v345, %v418
    %v420 = vpop.f32.mrf.mxu0
    %421 = vdwg.mxu0
    %vm422 = vcmp.gt.f32.partialorder %v414, 0.0
    %vm423 = vcmp.gt.f32.partialorder %v419, 0.0
    %v424 = vmul.f32 %v414, 0.2
    %v425 = vmul.f32 %v419, 0.2
    %v426 = vsel %vm422, %v414, %v424
    %v427 = vsel %vm423, %v419, %v425
    %v428 = vld [vmem:[#allocation8] sm:$0xff]
    %v429 = vld [vmem:[#allocation8 + $0x8] sm:$0xff]
    %v430 = vld [vmem:[#allocation8 + $0x10] sm:$0xff]
    %v431 = vld [vmem:[#allocation8 + $0x18] sm:$0xff]
    %v432 = vld [vmem:[#allocation8 + $0x20] sm:$0xff]
    %v433 = vld [vmem:[#allocation8 + $0x28] sm:$0xff]
    %v434 = vld [vmem:[#allocation8 + $0x30] sm:$0xff]
    %v435 = vld [vmem:[#allocation8 + $0x38] sm:$0xff]
    %v436 = vld [vmem:[#allocation8 + $0x40] sm:$0xff]
    %v437 = vld [vmem:[#allocation8 + $0x48] sm:$0xff]
    %v438 = vld [vmem:[#allocation8 + $0x50] sm:$0xff]
    %v439 = vld [vmem:[#allocation8 + $0x58] sm:$0xff]
    %v440 = vld [vmem:[#allocation8 + $0x60] sm:$0xff]
    %v441 = vld [vmem:[#allocation8 + $0x68] sm:$0xff]
    %v442 = vld [vmem:[#allocation8 + $0x70] sm:$0xff]
    %v443 = vld [vmem:[#allocation8 + $0x78] sm:$0xff]
    %v444 = vld [vmem:[%s8] sm:$0x1]
    %v446 = vlaneseq
    %v447 = vshrl.u32 %v446, 7
    %v448 = vsub.s32 0, %v447
    %v449 = vrot.slane %v444, %v448
    %451 = vmatprep.subr.mxu0 0.0
    %452 = vmatpush1.msra.mxu0 %v443
    %453 = vmatprep.subr.mxu0 0.0
    %454 = vmatpush1.msra.mxu0 %v442
    %455 = vmatprep.subr.mxu0 0.0
    %456 = vmatpush1.msra.mxu0 %v441
    %457 = vmatprep.subr.mxu0 0.0
    %458 = vmatpush1.msra.mxu0 %v440
    %459 = vmatprep.subr.mxu0 0.0
    %460 = vmatpush1.msra.mxu0 %v439
    %461 = vmatprep.subr.mxu0 0.0
    %462 = vmatpush1.msra.mxu0 %v438
    %463 = vmatprep.subr.mxu0 0.0
    %464 = vmatpush1.msra.mxu0 %v437
    %465 = vmatprep.subr.mxu0 0.0
    %466 = vmatpush1.msra.mxu0 %v436
    %467 = vmatprep.subr.mxu0 0.0
    %468 = vmatpush1.msra.mxu0 %v435
    %469 = vmatprep.subr.mxu0 0.0
    %470 = vmatpush1.msra.mxu0 %v434
    %471 = vmatprep.subr.mxu0 0.0
    %472 = vmatpush1.msra.mxu0 %v433
    %473 = vmatprep.subr.mxu0 0.0
    %474 = vmatpush1.msra.mxu0 %v432
    %475 = vmatprep.subr.mxu0 0.0
    %476 = vmatpush1.msra.mxu0 %v431
    %477 = vmatprep.subr.mxu0 0.0
    %478 = vmatpush1.msra.mxu0 %v430
    %479 = vmatprep.subr.mxu0 0.0
    %480 = vmatpush1.msra.mxu0 %v429
    %481 = vmatprep.subr.mxu0 0.0
    %482 = vmatpush1.msra.mxu0 %v428
    %483 = vmatprep.subr.mxu0 0.0
    %484 = vmatpush2.msra.mxu0 0.0
    %485 = vmatprep.subr.mxu0 0.0
    %486 = vmatpush2.msra.mxu0 0.0
    %487 = vmatprep.subr.mxu0 0.0
    %488 = vmatpush2.msra.mxu0 0.0
    %489 = vmatprep.subr.mxu0 0.0
    %490 = vmatpush2.msra.mxu0 0.0
    %491 = vmatprep.subr.mxu0 0.0
    %492 = vmatpush2.msra.mxu0 0.0
    %493 = vmatprep.subr.mxu0 0.0
    %494 = vmatpush2.msra.mxu0 0.0
    %495 = vmatprep.subr.mxu0 0.0
    %496 = vmatpush2.msra.mxu0 0.0
    %497 = vmatprep.subr.mxu0 0.0
    %498 = vmatpush2.msra.mxu0 0.0
    %499 = vmatprep.subr.mxu0 0.0
    %500 = vmatpush2.msra.mxu0 0.0
    %501 = vmatprep.subr.mxu0 0.0
    %502 = vmatpush2.msra.mxu0 0.0
    %503 = vmatprep.subr.mxu0 0.0
    %504 = vmatpush2.msra.mxu0 0.0
    %505 = vmatprep.subr.mxu0 0.0
    %506 = vmatpush2.msra.mxu0 0.0
    %507 = vmatprep.subr.mxu0 0.0
    %508 = vmatpush2.msra.mxu0 0.0
    %509 = vmatprep.subr.mxu0 0.0
    %510 = vmatpush2.msra.mxu0 0.0
    %511 = vmatprep.subr.mxu0 0.0
    %512 = vmatpush2.msra.mxu0 0.0
    %513 = vmatprep.subr.mxu0 0.0
    %514 = vmatpush2.msra.mxu0 0.0
    %515 = vmatprep.mubr.f32.mxu0 0.0
    %516 = vmatmul.mubr.f32.gmra.mxu0 %v426
    %v517 = vpop.f32.mrf.mxu0
    %v518 = vadd.f32 %v449, %v517
    %v519 = vpop.f32.mrf.mxu0
    %520 = vmatprep.mubr.f32.mxu0 0.0
    %521 = vmatmul.mubr.f32.gmra.mxu0 %v427
    %v522 = vpop.f32.mrf.mxu0
    %v523 = vadd.f32 %v449, %v522
    %v524 = vpop.f32.mrf.mxu0
    %525 = vdwg.mxu0
    %vm526 = vcmp.gt.f32.partialorder %v518, 0.0
    %vm527 = vcmp.gt.f32.partialorder %v523, 0.0
    %v528 = vmul.f32 %v518, 0.2
    %v529 = vmul.f32 %v523, 0.2
    %v530 = vsel %vm526, %v518, %v528
    %v531 = vsel %vm527, %v523, %v529
    %v532 = vld [vmem:[#allocation10] sm:$0xff]
    %v533 = vld [vmem:[#allocation10 + $0x8] sm:$0xff]
    %v534 = vld [vmem:[#allocation10 + $0x10] sm:$0xff]
    %v535 = vld [vmem:[#allocation10 + $0x18] sm:$0xff]
    %v536 = vld [vmem:[#allocation10 + $0x20] sm:$0xff]
    %v537 = vld [vmem:[#allocation10 + $0x28] sm:$0xff]
    %v538 = vld [vmem:[#allocation10 + $0x30] sm:$0xff]
    %v539 = vld [vmem:[#allocation10 + $0x38] sm:$0xff]
    %v540 = vld [vmem:[#allocation10 + $0x40] sm:$0xff]
    %v541 = vld [vmem:[#allocation10 + $0x48] sm:$0xff]
    %v542 = vld [vmem:[#allocation10 + $0x50] sm:$0xff]
    %v543 = vld [vmem:[#allocation10 + $0x58] sm:$0xff]
    %v544 = vld [vmem:[#allocation10 + $0x60] sm:$0xff]
    %v545 = vld [vmem:[#allocation10 + $0x68] sm:$0xff]
    %v546 = vld [vmem:[#allocation10 + $0x70] sm:$0xff]
    %v547 = vld [vmem:[#allocation10 + $0x78] sm:$0xff]
    %v548 = vld [vmem:[%s10] sm:$0x1]
    %v550 = vlaneseq
    %v551 = vshrl.u32 %v550, 7
    %v552 = vsub.s32 0, %v551
    %v553 = vrot.slane %v548, %v552
    %555 = vmatprep.subr.mxu0 0.0
    %556 = vmatpush1.msra.mxu0 %v547
    %557 = vmatprep.subr.mxu0 0.0
    %558 = vmatpush1.msra.mxu0 %v546
    %559 = vmatprep.subr.mxu0 0.0
    %560 = vmatpush1.msra.mxu0 %v545
    %561 = vmatprep.subr.mxu0 0.0
    %562 = vmatpush1.msra.mxu0 %v544
    %563 = vmatprep.subr.mxu0 0.0
    %564 = vmatpush1.msra.mxu0 %v543
    %565 = vmatprep.subr.mxu0 0.0
    %566 = vmatpush1.msra.mxu0 %v542
    %567 = vmatprep.subr.mxu0 0.0
    %568 = vmatpush1.msra.mxu0 %v541
    %569 = vmatprep.subr.mxu0 0.0
    %570 = vmatpush1.msra.mxu0 %v540
    %571 = vmatprep.subr.mxu0 0.0
    %572 = vmatpush1.msra.mxu0 %v539
    %573 = vmatprep.subr.mxu0 0.0
    %574 = vmatpush1.msra.mxu0 %v538
    %575 = vmatprep.subr.mxu0 0.0
    %576 = vmatpush1.msra.mxu0 %v537
    %577 = vmatprep.subr.mxu0 0.0
    %578 = vmatpush1.msra.mxu0 %v536
    %579 = vmatprep.subr.mxu0 0.0
    %580 = vmatpush1.msra.mxu0 %v535
    %581 = vmatprep.subr.mxu0 0.0
    %582 = vmatpush1.msra.mxu0 %v534
    %583 = vmatprep.subr.mxu0 0.0
    %584 = vmatpush1.msra.mxu0 %v533
    %585 = vmatprep.subr.mxu0 0.0
    %586 = vmatpush1.msra.mxu0 %v532
    %587 = vmatprep.subr.mxu0 0.0
    %588 = vmatpush2.msra.mxu0 0.0
    %589 = vmatprep.subr.mxu0 0.0
    %590 = vmatpush2.msra.mxu0 0.0
    %591 = vmatprep.subr.mxu0 0.0
    %592 = vmatpush2.msra.mxu0 0.0
    %593 = vmatprep.subr.mxu0 0.0
    %594 = vmatpush2.msra.mxu0 0.0
    %595 = vmatprep.subr.mxu0 0.0
    %596 = vmatpush2.msra.mxu0 0.0
    %597 = vmatprep.subr.mxu0 0.0
    %598 = vmatpush2.msra.mxu0 0.0
    %599 = vmatprep.subr.mxu0 0.0
    %600 = vmatpush2.msra.mxu0 0.0
    %601 = vmatprep.subr.mxu0 0.0
    %602 = vmatpush2.msra.mxu0 0.0
    %603 = vmatprep.subr.mxu0 0.0
    %604 = vmatpush2.msra.mxu0 0.0
    %605 = vmatprep.subr.mxu0 0.0
    %606 = vmatpush2.msra.mxu0 0.0
    %607 = vmatprep.subr.mxu0 0.0
    %608 = vmatpush2.msra.mxu0 0.0
    %609 = vmatprep.subr.mxu0 0.0
    %610 = vmatpush2.msra.mxu0 0.0
    %611 = vmatprep.subr.mxu0 0.0
    %612 = vmatpush2.msra.mxu0 0.0
    %613 = vmatprep.subr.mxu0 0.0
    %614 = vmatpush2.msra.mxu0 0.0
    %615 = vmatprep.subr.mxu0 0.0
    %616 = vmatpush2.msra.mxu0 0.0
    %617 = vmatprep.subr.mxu0 0.0
    %618 = vmatpush2.msra.mxu0 0.0
    %619 = vmatprep.mubr.f32.mxu0 0.0
    %620 = vmatmul.mubr.f32.gmra.mxu0 %v530
    %v621 = vpop.f32.mrf.mxu0
    %v622 = vadd.f32 %v553, %v621
    %v623 = vpop.f32.mrf.mxu0
    %624 = vmatprep.mubr.f32.mxu0 0.0
    %625 = vmatmul.mubr.f32.gmra.mxu0 %v531
    %v626 = vpop.f32.mrf.mxu0
    %v627 = vadd.f32 %v553, %v626
    %v628 = vpop.f32.mrf.mxu0
    %629 = vdwg.mxu0
    %vm630 = vcmp.gt.f32.partialorder %v622, 0.0
    %vm631 = vcmp.gt.f32.partialorder %v627, 0.0
    %v632 = vmul.f32 %v622, 0.2
    %v633 = vmul.f32 %v627, 0.2
    %v634 = vsel %vm630, %v622, %v632
    %v635 = vsel %vm631, %v627, %v633
    %v636 = vld [vmem:[%s11] sm:$0x1]
    %v638 = vlaneseq
    %v639 = vshrl.u32 %v638, 7
    %v640 = vsub.s32 0, %v639
    %v641 = vrot.slane %v636, %v640
    %v643 = vmul.f32 %v634, %v641
    %v644 = vmul.f32 %v635, %v641
    %645 = vadd.xlane.f32.xlu0 %v643
    %v646 = vpop.xlane.xlu0 %645
    %647 = vadd.xlane.f32.xlu0 %v644
    %v648 = vpop.xlane.xlu0 %647
    %v649 = vld [vmem:[#allocation2] sm:$0x1]
    %v651 = vlaneseq
    %v652 = vshrl.u32 %v651, 7
    %v653 = vsub.s32 0, %v652
    %v654 = vrot.slane %v649, %v653
    %v656 = vadd.f32 %v646, %v654
    %v657 = vadd.f32 %v648, %v654
    %vm658 = vcmask 7168
    %659 = vst.msk [vmem:[%s13] sm:$0xff] %vm658, %v656
    %660 = vst.msk [vmem:[%s13 + $0x8] sm:$0xff] %vm658, %v657
    // Predicated region
    $region74: #{lgn_discriminator_forward.1} parent=1 // pred_check
      _
    $region75: #{lgn_discriminator_forward.1} parent=1 // pred_check_branch
      %662 = sbr.rel (0) target = $region77
    $region76: #{lgn_discriminator_forward.1} parent=1 // pred_region
      _
    $region77: #{lgn_discriminator_forward.1} parent=1 // pred_fallthru
      _
    // Predicated region
    $region78: #{lgn_discriminator_forward.1} parent=1 // pred_check
      _
    $region79: #{lgn_discriminator_forward.1} parent=1 // pred_check_branch
      %664 = sbr.rel (0) target = $region81
    $region80: #{lgn_discriminator_forward.1} parent=1 // pred_region
      _
    $region81: #{lgn_discriminator_forward.1} parent=1 // pred_fallthru
      _
    %665 = vsyncpa [#allocation4], 1
    %666 = vsyncpa [#allocation6], 1
    %667 = vsyncpa [#allocation9], 1

</llo_original>
